<compile_context>
chip_gen: v7x
topology: tpu7x:2x2x1
jax: 0.10.0
libtpu: 0.0.40
codegen_flags: <defaults>
</compile_context>

<pallas_src>
import jax
import jax.numpy as jnp
from jax import lax
from jax.experimental import pallas as pl
from jax.experimental.pallas import tpu as pltpu


def _add_uniform_kernel(seed_ref, x1_ref, o_ref):
    """o = x1 + U[0,1) noise; the noise is generated inside the kernel."""
    shape = o_ref.shape

    # Per-element counter (flat index) as uint32.
    rows = lax.broadcasted_iota(jnp.uint32, shape, 0)
    cols = lax.broadcasted_iota(jnp.uint32, shape, 1)
    idx = rows * jnp.uint32(shape[1]) + cols

    # splitmix32-style finalizer: cheap VALU-only bit mixing, no TPU-only prims.
    seed = seed_ref[0].astype(jnp.uint32)
    x = idx + (seed + jnp.uint32(1)) * jnp.uint32(0x9E3779B9)
    x = (x ^ (x >> jnp.uint32(16))) * jnp.uint32(0x7FEB352D)
    x = (x ^ (x >> jnp.uint32(15))) * jnp.uint32(0x846CA68B)
    x = x ^ (x >> jnp.uint32(16))

    # Mantissa trick: 23 random mantissa bits with exponent 127 -> [1,2), -1 -> [0,1).
    fbits = (x >> jnp.uint32(9)) | jnp.uint32(0x3F800000)
    u01 = lax.bitcast_convert_type(fbits, jnp.float32) - jnp.float32(1.0)

    # x3 = x1 + t1 (elementwise add; both operands are (2, 2)).
    o_ref[...] = (x1_ref[...] + u01.astype(x1_ref.dtype)).astype(o_ref.dtype)


def model_forward(x1: jax.Array, x2: jax.Array, seed: int) -> jax.Array:
    # x2 is only a shape/dtype donor (rand_like(x2)); do NOT DMA it into VMEM.
    out_dtype = jnp.result_type(x1.dtype, x2.dtype)
    seed_arr = jnp.asarray([seed], dtype=jnp.int32)
    return pl.pallas_call(
        _add_uniform_kernel,
        out_shape=jax.ShapeDtypeStruct(x2.shape, out_dtype),
        in_specs=[
            pl.BlockSpec(memory_space=pltpu.MemorySpace.SMEM),   # seed scalar
            pl.BlockSpec(memory_space=pltpu.MemorySpace.VMEM),   # x1 (2, 2)
        ],
        out_specs=pl.BlockSpec(memory_space=pltpu.MemorySpace.VMEM),
    )(seed_arr, x1)


if __name__ == "__main__":
    key = jax.random.PRNGKey(0)
    k_param, k_input = jax.random.split(key)

    # Deterministic "parameter" x1 ~ N(0,1), shape (2, 2) as in the module's __init__.
    x1 = jax.random.normal(k_param, (2, 2), dtype=jnp.float32)
    # Example input x2, shape (2, 2) (shape/dtype donor for rand_like).
    x2 = jax.random.normal(k_input, (2, 2), dtype=jnp.float32)

    out = jax.block_until_ready(model_forward(x1, x2, seed=1234))

    # Sanity: output must equal x1 + noise where noise is uniform in [0, 1).
    noise = out - x1
    assert out.shape == (2, 2) and out.dtype == jnp.float32
    assert bool(jnp.all(noise >= 0.0)) and bool(jnp.all(noise < 1.0 + 1e-6))

    print("KERNEL_OK")
</pallas_src>

<mosaic_0001>
module attributes {stable_mosaic.version = 11 : i64} {
  func.func @_add_uniform_kernel(%arg0: memref<1xi32, #tpu.memory_space<smem>>, %arg1: memref<2x2xf32, #tpu.memory_space<vmem>>, %arg2: memref<2x2xf32, #tpu.memory_space<vmem>>) attributes {dimension_semantics = [], scalar_prefetch = 0 : i64, scratch_operands = 0 : i64, tpu.core_type = #tpu.core_type<tc>} {
    %0 = tpu.iota {dimensions = array<i32: 0>} : vector<2x2xi32>
    %1 = tpu.iota {dimensions = array<i32: 1>} : vector<2x2xi32>
    %c2_i32 = arith.constant 2 : i32
    %2 = vector.broadcast %c2_i32 : i32 to vector<2x2xi32>
    %3 = arith.muli %0, %2 : vector<2x2xi32>
    %4 = arith.addi %3, %1 : vector<2x2xi32>
    %c0 = arith.constant 0 : index
    %5 = memref.load %arg0[%c0] : memref<1xi32, #tpu.memory_space<smem>>
    %c1_i32 = arith.constant 1 : i32
    %6 = arith.addi %5, %c1_i32 : i32
    %c-1640531527_i32 = arith.constant -1640531527 : i32
    %7 = arith.muli %6, %c-1640531527_i32 : i32
    %8 = vector.broadcast %7 : i32 to vector<2x2xi32>
    %9 = arith.addi %4, %8 : vector<2x2xi32>
    %c16_i32 = arith.constant 16 : i32
    %10 = vector.broadcast %c16_i32 : i32 to vector<2x2xi32>
    %11 = arith.shrui %9, %10 : vector<2x2xi32>
    %12 = arith.xori %9, %11 : vector<2x2xi32>
    %c2146121005_i32 = arith.constant 2146121005 : i32
    %13 = vector.broadcast %c2146121005_i32 : i32 to vector<2x2xi32>
    %14 = arith.muli %12, %13 : vector<2x2xi32>
    %c15_i32 = arith.constant 15 : i32
    %15 = vector.broadcast %c15_i32 : i32 to vector<2x2xi32>
    %16 = arith.shrui %14, %15 : vector<2x2xi32>
    %17 = arith.xori %14, %16 : vector<2x2xi32>
    %c-2073254261_i32 = arith.constant -2073254261 : i32
    %18 = vector.broadcast %c-2073254261_i32 : i32 to vector<2x2xi32>
    %19 = arith.muli %17, %18 : vector<2x2xi32>
    %c16_i32_0 = arith.constant 16 : i32
    %20 = vector.broadcast %c16_i32_0 : i32 to vector<2x2xi32>
    %21 = arith.shrui %19, %20 : vector<2x2xi32>
    %22 = arith.xori %19, %21 : vector<2x2xi32>
    %c9_i32 = arith.constant 9 : i32
    %23 = vector.broadcast %c9_i32 : i32 to vector<2x2xi32>
    %24 = arith.shrui %22, %23 : vector<2x2xi32>
    %c1065353216_i32 = arith.constant 1065353216 : i32
    %25 = vector.broadcast %c1065353216_i32 : i32 to vector<2x2xi32>
    %26 = arith.ori %24, %25 : vector<2x2xi32>
    %27 = tpu.bitcast %26 : vector<2x2xi32> -> vector<2x2xf32>
    %cst = arith.constant 1.000000e+00 : f32
    %28 = vector.broadcast %cst : f32 to vector<2x2xf32>
    %29 = arith.subf %27, %28 : vector<2x2xf32>
    %c0_1 = arith.constant 0 : index
    %c0_2 = arith.constant 0 : index
    %30 = vector.load %arg1[%c0_1, %c0_2] : memref<2x2xf32, #tpu.memory_space<vmem>>, vector<2x2xf32>
    %31 = arith.addf %30, %29 : vector<2x2xf32>
    %c0_3 = arith.constant 0 : index
    %c0_4 = arith.constant 0 : index
    %32 = vector.load %arg2[%c0_3, %c0_4] : memref<2x2xf32, #tpu.memory_space<vmem>>, vector<2x2xf32>
    tpu.vector_store %arg2[%c0_3, %c0_4], %31 {strides = array<i32>} : memref<2x2xf32, #tpu.memory_space<vmem>>, vector<2x2xf32>,
    return
  }
}

</mosaic_0001>

<llo_original>
// kernel: tpu_custom_call.1
$region0: #{tpu_custom_call.1}
  #allocation0 [shape = 'u32[]', space=smem, size = 0x4, offset = 0x4, fixed_abs, tag = 'smem constant byte address 0x4 - core index']
  #allocation1 [shape = 'u32[144,128]{1,0:T(1,128)}', space=vmem, size = 0x12000, scoped, tag = 'internal scratch']
  #allocation2 [shape = 's32[1]{0:T(128)S(6)}', space=smem, size = 0x200, scoped, tag = 'scoped memory for tpu_custom_call.1']
  %s0 = inlined_call_operand.<no memory space> [shape: s32[1], index: 0, kind: input, shape index: {}]
  %s1 = inlined_call_operand.vmem [shape: f32[2,2], index: 1, kind: input, shape index: {}]
  %s2 = inlined_call_operand.hbm [shape: f32[2,2], index: 2, kind: output, shape index: {}]
  %s3 = sld [smem:[#allocation0]]
  $region18: #{tpu_custom_call.1} parent=0
    _
  %s5 = ssub.s32 1, %s3
  %s6 = scalar_select 0, %s5, %s3
  %7 = sst [smem:[#allocation2]] %s0
  $region1: #{tpu_custom_call.1} parent=0
    #allocation3 [shape = 'u8[1024]{0}', space=vmem, size = 0x400, scoped, tag = 'output window, operand 0, single buffered']
    #allocation4 [shape = 's32[1]{0}', space=sflag, size = 0x4, scoped, tag = 'scoped memory for tpu_custom_call.1']
    %8 = vsyncpa [#allocation4], 0
    // Predicated region
    $region2: #{tpu_custom_call.1} parent=1 // pred_check
      _
    $region3: #{tpu_custom_call.1} parent=1 // pred_check_branch
      %10 = sbr.rel (0) target = $region5
    $region4: #{tpu_custom_call.1} parent=1 // pred_region
      _
    $region5: #{tpu_custom_call.1} parent=1 // pred_fallthru
      _
    // Predicated region
    $region6: #{tpu_custom_call.1} parent=1 // pred_check
      _
    $region7: #{tpu_custom_call.1} parent=1 // pred_check_branch
      %12 = sbr.rel (0) target = $region9
    $region8: #{tpu_custom_call.1} parent=1 // pred_region
      _
    $region9: #{tpu_custom_call.1} parent=1 // pred_fallthru
      _
    %v13 = vlaneseq
    %v14 = vshrl.u32 %v13, 7
    %v15 = vlaneseq
    %v16 = vand.u32 %v15, 127
    %v17 = vmul.u32 %v14, 2
    %v18 = vadd.s32 %v17, %v16
    %s19 = sld [smem:[#allocation2]]
    %s20 = sadd.s32 %s19, 1
    %s21 = smul.u32 %s20, 2654435769
    %v22 = vstv %s21
    %v23 = vadd.s32 %v18, %v22
    %v24 = vshrl.u32 %v23, 16
    %v25 = vxor.u32 %v23, %v24
    %v26 = vmul.u32 %v25, 2146121005
    %v27 = vshrl.u32 %v26, 15
    %v28 = vxor.u32 %v26, %v27
    %v29 = vmul.u32 %v28, 2221713035
    %v30 = vshrl.u32 %v29, 16
    %v31 = vxor.u32 %v29, %v30
    %v32 = vshrl.u32 %v31, 9
    %v33 = vor.u32 %v32, 1065353216
    %v35 = vsub.f32 %v33, 1.0
    %v36 = vld [vmem:[%s1] sm:$0x3]
    %v37 = vadd.f32 %v36, %v35
    %vm38 = vcmask 9216
    %39 = vst.msk [vmem:[#allocation3] sm:$0x3] %vm38, %v37
    // Predicated region
    $region10: #{tpu_custom_call.1} parent=1 // pred_check
      _
    $region11: #{tpu_custom_call.1} parent=1 // pred_check_branch
      %41 = sbr.rel (0) target = $region13
    $region12: #{tpu_custom_call.1} parent=1 // pred_region
      %s43 = ssub.s32 32, 32
      %44 = vsyncadd [#allocation4], %s43
      %s46 = sshll.u32 [#allocation3], 4
      %s47 = int_to_ptr.vmem [resolvable:$true] %s46
      %49 = dma.vmem_to_hbm [thread:$0]  %s47, 32, %s2, [#allocation4]
    $region13: #{tpu_custom_call.1} parent=1 // pred_fallthru
      _
    // Predicated region
    $region14: #{tpu_custom_call.1} parent=1 // pred_check
      _
    $region15: #{tpu_custom_call.1} parent=1 // pred_check_branch
      %51 = sbr.rel (0) target = $region17
    $region16: #{tpu_custom_call.1} parent=1 // pred_region
      %52 = dma.done [#allocation4], 32
    $region17: #{tpu_custom_call.1} parent=1 // pred_fallthru
      _
    %53 = vsyncpa [#allocation4], 1

</llo_original>
